<compile_context>
chip_gen: v5e
topology: v5e:2x2
jax: 0.10.0
libtpu: 0.0.40
codegen_flags: <defaults>
</compile_context>

<pallas_src>
import functools

import jax
import jax.numpy as jnp
from jax import lax
from jax.experimental import pallas as pl
from jax.experimental.pallas import tpu as pltpu

# ---- static hyper-parameters (match nn.Module __init__ defaults) -----------
STATE_DIM = 16
ACTION_DIM = 4
LAYER_DIM = 32
N_HIDDEN = 1
INIT_W = 0.003
LOG_STD_MIN = -10.0
LOG_STD_MAX = 2.0
SOFTPLUS_THRESHOLD = 10.0  # F.softplus(..., threshold=10); unreachable after clamp

MAX_BATCH_TILE = 2048  # rows per grid step; multiple of 8, small VMEM footprint


def _round_up(x, m):
    return ((x + m - 1) // m) * m


def _policy_kernel(state_ref, w1_ref, b1_ref, w2_ref, b2_ref, wh_ref, bh_ref,
                   out_ref, *, n_hidden):
    # linear1 + ReLU
    x = jnp.dot(state_ref[...], w1_ref[...],
                preferred_element_type=jnp.float32) + b1_ref[...]
    x = jnp.maximum(x, 0.0)

    # linear2 = Sequential(Linear + ReLU) * n_hidden  (static unroll)
    for i in range(n_hidden):
        x = jnp.dot(x, w2_ref[i], preferred_element_type=jnp.float32) + b2_ref[i]
        x = jnp.maximum(x, 0.0)

    # fused heads: [:, :ACTION_DIM] = mean, [:, ACTION_DIM:] = log_std
    y = jnp.dot(x, wh_ref[...], preferred_element_type=jnp.float32) + bh_ref[...]

    # std path: clamp then softplus.  clamp max (2.0) < threshold (10.0), so
    # softplus's linear branch is dead -> plain log1p(exp(.)).
    ls = jnp.clip(y, LOG_STD_MIN, LOG_STD_MAX)
    std = jnp.log1p(jnp.exp(ls))

    col = lax.broadcasted_iota(jnp.int32, y.shape, 1)
    out_ref[...] = jnp.where(col >= ACTION_DIM, std, y).astype(out_ref.dtype)


def policy_forward(state, params):
    """state: [B, STATE_DIM] f32 -> (mean [B, ACTION_DIM], std [B, ACTION_DIM])."""
    b = state.shape[0]

    # batch tiling: tile rows (multiple of 8), pad batch to a tile multiple.
    tb = min(_round_up(b, 8), MAX_BATCH_TILE)
    padded_b = _round_up(b, tb)
    if padded_b != b:
        state = jnp.pad(state, ((0, padded_b - b), (0, 0)))
    grid = (padded_b // tb,)

    # fuse mean / log_std head weights -> one [LAYER_DIM, 2*ACTION_DIM] matmul.
    wh = jnp.concatenate([params["wm"], params["wls"]], axis=1)
    bh = jnp.concatenate([params["bm"], params["bls"]], axis=1)

    param_bytes = sum(int(p.size) * p.dtype.itemsize for p in params.values())
    cost = pl.CostEstimate(
        flops=2 * padded_b * (STATE_DIM * LAYER_DIM
                              + N_HIDDEN * LAYER_DIM * LAYER_DIM
                              + LAYER_DIM * 2 * ACTION_DIM),
        transcendentals=2 * padded_b * ACTION_DIM,  # exp + log1p per std element
        bytes_accessed=padded_b * (STATE_DIM + 2 * ACTION_DIM) * 4 + param_bytes,
    )

    kernel = functools.partial(_policy_kernel, n_hidden=N_HIDDEN)
    out = pl.pallas_call(
        kernel,
        out_shape=jax.ShapeDtypeStruct((padded_b, 2 * ACTION_DIM), jnp.float32),
        grid=grid,
        in_specs=[
            pl.BlockSpec((tb, STATE_DIM), lambda i: (i, 0)),              # state
            pl.BlockSpec((STATE_DIM, LAYER_DIM), lambda i: (0, 0)),       # w1
            pl.BlockSpec((1, LAYER_DIM), lambda i: (0, 0)),               # b1
            pl.BlockSpec((N_HIDDEN, LAYER_DIM, LAYER_DIM),
                         lambda i: (0, 0, 0)),                            # w2
            pl.BlockSpec((N_HIDDEN, 1, LAYER_DIM), lambda i: (0, 0, 0)),  # b2
            pl.BlockSpec((LAYER_DIM, 2 * ACTION_DIM), lambda i: (0, 0)),  # wh
            pl.BlockSpec((1, 2 * ACTION_DIM), lambda i: (0, 0)),          # bh
        ],
        out_specs=pl.BlockSpec((tb, 2 * ACTION_DIM), lambda i: (i, 0)),
        compiler_params=pltpu.CompilerParams(
            dimension_semantics=("parallel",),
            vmem_limit_bytes=32 * 1024 * 1024,
        ),
        cost_estimate=cost,
    )(state, params["w1"], params["b1"], params["w2"], params["b2"], wh, bh)

    out = out[:b]
    return out[:, :ACTION_DIM], out[:, ACTION_DIM:]


def init_params(key):
    """Deterministic parameter init mirroring the PyTorch module's shapes.

    Weights are returned already transposed to [in, out]; biases as [1, out]
    (or [n_hidden, 1, out]) so they broadcast over the batch inside the kernel.
    """
    keys = jax.random.split(key, 8)

    def u(k, shape, bound):
        return jax.random.uniform(k, shape, jnp.float32, -bound, bound)

    # default nn.Linear init: U(-1/sqrt(fan_in), 1/sqrt(fan_in))
    bound1 = 1.0 / jnp.sqrt(STATE_DIM)
    bound2 = 1.0 / jnp.sqrt(LAYER_DIM)

    return {
        "w1": u(keys[0], (STATE_DIM, LAYER_DIM), bound1),
        "b1": u(keys[1], (1, LAYER_DIM), bound1),
        "w2": u(keys[2], (N_HIDDEN, LAYER_DIM, LAYER_DIM), bound2),
        "b2": u(keys[3], (N_HIDDEN, 1, LAYER_DIM), bound2),
        # output heads: .uniform_(-init_w, init_w)
        "wm": u(keys[4], (LAYER_DIM, ACTION_DIM), INIT_W),
        "bm": u(keys[5], (1, ACTION_DIM), INIT_W),
        "wls": u(keys[6], (LAYER_DIM, ACTION_DIM), INIT_W),
        "bls": u(keys[7], (1, ACTION_DIM), INIT_W),
    }


def policy_forward_ref(state, params):
    """Pure-JAX reference for correctness checking."""
    x = jnp.maximum(state @ params["w1"] + params["b1"], 0.0)
    for i in range(N_HIDDEN):
        x = jnp.maximum(x @ params["w2"][i] + params["b2"][i], 0.0)
    mean = x @ params["wm"] + params["bm"]
    ls = jnp.clip(x @ params["wls"] + params["bls"], LOG_STD_MIN, LOG_STD_MAX)
    std = jnp.where(ls > SOFTPLUS_THRESHOLD, ls, jnp.log1p(jnp.exp(ls)))
    return mean, std


if __name__ == "__main__":
    key = jax.random.PRNGKey(0)
    pkey, skey = jax.random.split(key)

    params = init_params(pkey)

    ok = True
    for batch in (8, 6):  # 6 exercises the batch-padding path
        state = jax.random.normal(jax.random.fold_in(skey, batch),
                                  (batch, STATE_DIM), jnp.float32)

        mean, std = policy_forward(state, params)
        jax.block_until_ready((mean, std))

        mean_ref, std_ref = policy_forward_ref(state, params)
        ok &= mean.shape == (batch, ACTION_DIM) and std.shape == (batch, ACTION_DIM)
        ok &= bool(jnp.allclose(mean, mean_ref, atol=1e-5, rtol=1e-5))
        ok &= bool(jnp.allclose(std, std_ref, atol=1e-5, rtol=1e-5))
        ok &= bool(jnp.all(std > 0.0))

    assert ok
    print("KERNEL_OK")
</pallas_src>

<mosaic_0001>
module attributes {stable_mosaic.version = 11 : i64} {
  func.func @_policy_kernel(%arg0: i32, %arg1: memref<8x16xf32, #tpu.memory_space<vmem>>, %arg2: memref<16x32xf32, #tpu.memory_space<vmem>>, %arg3: memref<1x32xf32, #tpu.memory_space<vmem>>, %arg4: memref<1x32x32xf32, #tpu.memory_space<vmem>>, %arg5: memref<1x1x32xf32, #tpu.memory_space<vmem>>, %arg6: memref<32x8xf32, #tpu.memory_space<vmem>>, %arg7: memref<1x8xf32, #tpu.memory_space<vmem>>, %arg8: memref<8x8xf32, #tpu.memory_space<vmem>>) attributes {dimension_semantics = [#tpu.dimension_semantics<parallel>], iteration_bounds = array<i64: 1>, scalar_prefetch = 0 : i64, scratch_operands = 0 : i64, tpu.core_type = #tpu.core_type<tc>, window_params = [{transform_indices = @transform_0, window_bounds = array<i64: 8, 16>}, {pipeline_mode = #tpu.pipeline_mode<synchronous>, transform_indices = @transform_1, window_bounds = array<i64: 16, 32>}, {pipeline_mode = #tpu.pipeline_mode<synchronous>, transform_indices = @transform_2, window_bounds = array<i64: 1, 32>}, {pipeline_mode = #tpu.pipeline_mode<synchronous>, transform_indices = @transform_3, window_bounds = array<i64: 1, 32, 32>}, {pipeline_mode = #tpu.pipeline_mode<synchronous>, transform_indices = @transform_4, window_bounds = array<i64: 1, 1, 32>}, {pipeline_mode = #tpu.pipeline_mode<synchronous>, transform_indices = @transform_5, window_bounds = array<i64: 32, 8>}, {pipeline_mode = #tpu.pipeline_mode<synchronous>, transform_indices = @transform_6, window_bounds = array<i64: 1, 8>}, {transform_indices = @transform_7, window_bounds = array<i64: 8, 8>}]} {
    %c0 = arith.constant 0 : index
    %c0_0 = arith.constant 0 : index
    %0 = vector.load %arg1[%c0, %c0_0] : memref<8x16xf32, #tpu.memory_space<vmem>>, vector<8x16xf32>
    %c0_1 = arith.constant 0 : index
    %c0_2 = arith.constant 0 : index
    %1 = vector.load %arg2[%c0_1, %c0_2] : memref<16x32xf32, #tpu.memory_space<vmem>>, vector<16x32xf32>
    %cst = arith.constant dense<0.000000e+00> : vector<8x32xf32>
    %2 = tpu.matmul %0, %1, %cst {dimension_numbers = #tpu.dot_dimension_numbers<[1], [0], [0], [1], [0, 0, 1, 1], [], []>} : vector<8x16xf32>, vector<16x32xf32>, vector<8x32xf32> -> vector<8x32xf32>
    %c0_3 = arith.constant 0 : index
    %c0_4 = arith.constant 0 : index
    %3 = vector.load %arg3[%c0_3, %c0_4] : memref<1x32xf32, #tpu.memory_space<vmem>>, vector<1x32xf32>
    %4 = vector.broadcast %3 : vector<1x32xf32> to vector<8x32xf32>
    %5 = arith.addf %2, %4 : vector<8x32xf32>
    %cst_5 = arith.constant 0.000000e+00 : f32
    %6 = vector.broadcast %cst_5 : f32 to vector<8x32xf32>
    %7 = arith.maximumf %5, %6 : vector<8x32xf32>
    %c0_6 = arith.constant 0 : index
    %c0_7 = arith.constant 0 : index
    %c0_8 = arith.constant 0 : index
    %8 = vector.load %arg4[%c0_6, %c0_7, %c0_8] : memref<1x32x32xf32, #tpu.memory_space<vmem>>, vector<1x32x32xf32>
    %9 = vector.shape_cast %8 : vector<1x32x32xf32> to vector<32x32xf32>
    %cst_9 = arith.constant dense<0.000000e+00> : vector<8x32xf32>
    %10 = tpu.matmul %7, %9, %cst_9 {dimension_numbers = #tpu.dot_dimension_numbers<[1], [0], [0], [1], [0, 0, 1, 1], [], []>} : vector<8x32xf32>, vector<32x32xf32>, vector<8x32xf32> -> vector<8x32xf32>
    %c0_10 = arith.constant 0 : index
    %c0_11 = arith.constant 0 : index
    %c0_12 = arith.constant 0 : index
    %11 = vector.load %arg5[%c0_10, %c0_11, %c0_12] : memref<1x1x32xf32, #tpu.memory_space<vmem>>, vector<1x1x32xf32>
    %12 = vector.shape_cast %11 : vector<1x1x32xf32> to vector<1x32xf32>
    %13 = vector.broadcast %12 : vector<1x32xf32> to vector<8x32xf32>
    %14 = arith.addf %10, %13 : vector<8x32xf32>
    %cst_13 = arith.constant 0.000000e+00 : f32
    %15 = vector.broadcast %cst_13 : f32 to vector<8x32xf32>
    %16 = arith.maximumf %14, %15 : vector<8x32xf32>
    %c0_14 = arith.constant 0 : index
    %c0_15 = arith.constant 0 : index
    %17 = vector.load %arg6[%c0_14, %c0_15] : memref<32x8xf32, #tpu.memory_space<vmem>>, vector<32x8xf32>
    %cst_16 = arith.constant dense<0.000000e+00> : vector<8x8xf32>
    %18 = tpu.matmul %16, %17, %cst_16 {dimension_numbers = #tpu.dot_dimension_numbers<[1], [0], [0], [1], [0, 0, 1, 1], [], []>} : vector<8x32xf32>, vector<32x8xf32>, vector<8x8xf32> -> vector<8x8xf32>
    %c0_17 = arith.constant 0 : index
    %c0_18 = arith.constant 0 : index
    %19 = vector.load %arg7[%c0_17, %c0_18] : memref<1x8xf32, #tpu.memory_space<vmem>>, vector<1x8xf32>
    %20 = vector.broadcast %19 : vector<1x8xf32> to vector<8x8xf32>
    %21 = arith.addf %18, %20 : vector<8x8xf32>
    %cst_19 = arith.constant -1.000000e+01 : f32
    %cst_20 = arith.constant 2.000000e+00 : f32
    %22 = vector.broadcast %cst_19 : f32 to vector<8x8xf32>
    %23 = arith.maximumf %22, %21 : vector<8x8xf32>
    %24 = vector.broadcast %cst_20 : f32 to vector<8x8xf32>
    %25 = arith.minimumf %24, %23 : vector<8x8xf32>
    %26 = math.exp %25 : vector<8x8xf32>
    %27 = math.log1p %26 : vector<8x8xf32>
    %28 = tpu.iota {dimensions = array<i32: 1>} : vector<8x8xi32>
    %c4_i32 = arith.constant 4 : i32
    %29 = vector.broadcast %c4_i32 : i32 to vector<8x8xi32>
    %30 = arith.cmpi sge, %28, %29 : vector<8x8xi32>
    %31 = arith.select %30, %27, %21 : vector<8x8xi1>, vector<8x8xf32>
    %c0_21 = arith.constant 0 : index
    %c0_22 = arith.constant 0 : index
    %32 = vector.load %arg8[%c0_21, %c0_22] : memref<8x8xf32, #tpu.memory_space<vmem>>, vector<8x8xf32>
    tpu.vector_store %arg8[%c0_21, %c0_22], %31 {strides = array<i32>} : memref<8x8xf32, #tpu.memory_space<vmem>>, vector<8x8xf32>,
    return
  }
  func.func @transform_0(%arg0: i32) -> (i32, i32) {
    %c0_i32 = arith.constant 0 : i32
    %c0_i32_0 = arith.constant 0 : i32
    return %arg0, %c0_i32 : i32, i32
  }
  func.func @transform_1(%arg0: i32) -> (i32, i32) {
    %c0_i32 = arith.constant 0 : i32
    %c0_i32_0 = arith.constant 0 : i32
    %c0_i32_1 = arith.constant 0 : i32
    return %c0_i32, %c0_i32_0 : i32, i32
  }
  func.func @transform_2(%arg0: i32) -> (i32, i32) {
    %c0_i32 = arith.constant 0 : i32
    %c0_i32_0 = arith.constant 0 : i32
    %c0_i32_1 = arith.constant 0 : i32
    return %c0_i32, %c0_i32_0 : i32, i32
  }
  func.func @transform_3(%arg0: i32) -> (i32, i32, i32) {
    %c0_i32 = arith.constant 0 : i32
    %c0_i32_0 = arith.constant 0 : i32
    %c0_i32_1 = arith.constant 0 : i32
    %c0_i32_2 = arith.constant 0 : i32
    return %c0_i32, %c0_i32_0, %c0_i32_1 : i32, i32, i32
  }
  func.func @transform_4(%arg0: i32) -> (i32, i32, i32) {
    %c0_i32 = arith.constant 0 : i32
    %c0_i32_0 = arith.constant 0 : i32
    %c0_i32_1 = arith.constant 0 : i32
    %c0_i32_2 = arith.constant 0 : i32
    return %c0_i32, %c0_i32_0, %c0_i32_1 : i32, i32, i32
  }
  func.func @transform_5(%arg0: i32) -> (i32, i32) {
    %c0_i32 = arith.constant 0 : i32
    %c0_i32_0 = arith.constant 0 : i32
    %c0_i32_1 = arith.constant 0 : i32
    return %c0_i32, %c0_i32_0 : i32, i32
  }
  func.func @transform_6(%arg0: i32) -> (i32, i32) {
    %c0_i32 = arith.constant 0 : i32
    %c0_i32_0 = arith.constant 0 : i32
    %c0_i32_1 = arith.constant 0 : i32
    return %c0_i32, %c0_i32_0 : i32, i32
  }
  func.func @transform_7(%arg0: i32) -> (i32, i32) {
    %c0_i32 = arith.constant 0 : i32
    %c0_i32_0 = arith.constant 0 : i32
    return %arg0, %c0_i32 : i32, i32
  }
}

</mosaic_0001>

<llo_original>
// kernel: tpu_custom_call.1
$region0: #{tpu_custom_call.1}
  #allocation0 [shape = 'u32[]', space=smem, size = 0x4, offset = 0x4, fixed_abs, tag = 'smem constant byte address 0x4 - core index']
  #allocation1 [shape = 'u32[72,128]{1,0:T(1,128)}', space=vmem, size = 0x9000, scoped, tag = 'internal scratch']
  %s0 = inlined_call_operand.vmem [shape: f32[8,16], index: 0, kind: input, shape index: {}]
  %s1 = inlined_call_operand.hbm [shape: f32[16,32], index: 1, kind: input, shape index: {}]
  %s2 = inlined_call_operand.vmem [shape: f32[1,32], index: 2, kind: input, shape index: {}]
  %s3 = inlined_call_operand.vmem [shape: f32[1,32,32], index: 3, kind: input, shape index: {}]
  %s4 = inlined_call_operand.vmem [shape: f32[1,1,32], index: 4, kind: input, shape index: {}]
  %s5 = inlined_call_operand.vmem [shape: f32[32,8], index: 5, kind: input, shape index: {}]
  %s6 = inlined_call_operand.vmem [shape: f32[1,8], index: 6, kind: input, shape index: {}]
  %s7 = inlined_call_operand.hbm [shape: f32[8,8], index: 7, kind: output, shape index: {}]
  %s8 = sld [smem:[#allocation0]]
  $region42: #{tpu_custom_call.1} parent=0
    _
  %s10 = ssub.s32 1, %s8
  %s11 = scalar_select 0, %s10, %s8
  $region1: #{tpu_custom_call.1} parent=0
    #allocation2 [shape = 'u8[8192]{0}', space=vmem, size = 0x2000, scoped, tag = 'input window, operand 1, single buffered']
    #allocation3 [shape = 's32[1]{0}', space=sflag, size = 0x4, scoped, tag = 'scoped memory for tpu_custom_call.1']
    #allocation4 [shape = 's32[1]{0}', space=sflag, size = 0x4, scoped, tag = 'scoped memory for tpu_custom_call.1']
    #allocation5 [shape = 'u8[4096]{0}', space=vmem, size = 0x1000, scoped, tag = 'output window, operand 0, single buffered']
    %12 = vsyncpa [#allocation3], 0
    %13 = vsyncpa [#allocation4], 0
    // Predicated region
    $region2: #{tpu_custom_call.1} parent=1 // pred_check
      _
    $region3: #{tpu_custom_call.1} parent=1 // pred_check_branch
      %15 = sbr.rel (0) target = $region5
    $region4: #{tpu_custom_call.1} parent=1 // pred_region
      _
    $region5: #{tpu_custom_call.1} parent=1 // pred_fallthru
      _
    // Predicated region
    $region6: #{tpu_custom_call.1} parent=1 // pred_check
      _
    $region7: #{tpu_custom_call.1} parent=1 // pred_check_branch
      %17 = sbr.rel (0) target = $region9
    $region8: #{tpu_custom_call.1} parent=1 // pred_region
      %19 = vsyncadd [#allocation3], 0
      %s20 = sshll.u32 %s1, 4
      %s21 = int_to_ptr.hbm [resolvable:$true] %s20
      %s22 = sshll.u32 [#allocation2], 4
      %s23 = int_to_ptr.vmem [resolvable:$true] %s22
      %28 = dma.hbm_to_vmem [thread:$0]  %s21, 256, %s23, [#allocation3], 128, 128, 8
    $region9: #{tpu_custom_call.1} parent=1 // pred_fallthru
      _
    // Predicated region
    $region10: #{tpu_custom_call.1} parent=1 // pred_check
      _
    $region11: #{tpu_custom_call.1} parent=1 // pred_check_branch
      %30 = sbr.rel (0) target = $region13
    $region12: #{tpu_custom_call.1} parent=1 // pred_region
      _
    $region13: #{tpu_custom_call.1} parent=1 // pred_fallthru
      _
    // Predicated region
    $region14: #{tpu_custom_call.1} parent=1 // pred_check
      _
    $region15: #{tpu_custom_call.1} parent=1 // pred_check_branch
      %32 = sbr.rel (0) target = $region17
    $region16: #{tpu_custom_call.1} parent=1 // pred_region
      _
    $region17: #{tpu_custom_call.1} parent=1 // pred_fallthru
      _
    // Predicated region
    $region18: #{tpu_custom_call.1} parent=1 // pred_check
      _
    $region19: #{tpu_custom_call.1} parent=1 // pred_check_branch
      %34 = sbr.rel (0) target = $region21
    $region20: #{tpu_custom_call.1} parent=1 // pred_region
      _
    $region21: #{tpu_custom_call.1} parent=1 // pred_fallthru
      _
    // Predicated region
    $region22: #{tpu_custom_call.1} parent=1 // pred_check
      _
    $region23: #{tpu_custom_call.1} parent=1 // pred_check_branch
      %36 = sbr.rel (0) target = $region25
    $region24: #{tpu_custom_call.1} parent=1 // pred_region
      _
    $region25: #{tpu_custom_call.1} parent=1 // pred_fallthru
      _
    // Predicated region
    $region26: #{tpu_custom_call.1} parent=1 // pred_check
      _
    $region27: #{tpu_custom_call.1} parent=1 // pred_check_branch
      %38 = sbr.rel (0) target = $region29
    $region28: #{tpu_custom_call.1} parent=1 // pred_region
      _
    $region29: #{tpu_custom_call.1} parent=1 // pred_fallthru
      _
    // Predicated region
    $region30: #{tpu_custom_call.1} parent=1 // pred_check
      _
    $region31: #{tpu_custom_call.1} parent=1 // pred_check_branch
      %40 = sbr.rel (0) target = $region33
    $region32: #{tpu_custom_call.1} parent=1 // pred_region
      %42 = dma.done [#allocation3], 256
    $region33: #{tpu_custom_call.1} parent=1 // pred_fallthru
      _
    %v43 = vld [vmem:[%s0] sm:$0xff]
    %v44 = vld [vmem:[#allocation2] sm:$0xff]
    %v45 = vld [vmem:[#allocation2 + $0x8] sm:$0xff]
    %v46 = vld [vmem:[%s2] sm:$0x1]
    %v48 = vperm.slane %v46, 0
    %vm50 = vcmask 130048
    %v52 = vsel %vm50, %v43, 0
    %54 = vmatpush.msra.mxu0 0.0
    %55 = vmatpush.msra.mxu0 0.0
    %56 = vmatpush.msra.mxu0 0.0
    %57 = vmatpush.msra.mxu0 0.0
    %58 = vmatpush.msra.mxu0 0.0
    %59 = vmatpush.msra.mxu0 0.0
    %60 = vmatpush.msra.mxu0 0.0
    %61 = vmatpush.msra.mxu0 0.0
    %62 = vmatpush.msra.mxu0 0.0
    %63 = vmatpush.msra.mxu0 0.0
    %64 = vmatpush.msra.mxu0 0.0
    %65 = vmatpush.msra.mxu0 0.0
    %66 = vmatpush.msra.mxu0 0.0
    %67 = vmatpush.msra.mxu0 0.0
    %68 = vmatpush.msra.mxu0 %v45
    %69 = vmatpush.msra.mxu0 %v44
    %70 = vmatmul.f32.gmra.mxu0 %v52
    %v71 = vpop.f32.mrf.mxu0
    %v72 = vadd.f32 %v48, %v71
    %73 = vdwg.mxu0
    %v74 = vmax.f32 %v72, 0.0
    %v75 = vld [vmem:[%s3] sm:$0xff]
    %v76 = vld [vmem:[%s3 + $0x8] sm:$0xff]
    %v77 = vld [vmem:[%s3 + $0x10] sm:$0xff]
    %v78 = vld [vmem:[%s3 + $0x18] sm:$0xff]
    %v79 = vld [vmem:[%s4] sm:$0x1]
    %v81 = vperm.slane %v79, 0
    %vm83 = vcmask 261120
    %v85 = vsel %vm83, %v74, 0
    %87 = vmatpush.msra.mxu0 0.0
    %88 = vmatpush.msra.mxu0 0.0
    %89 = vmatpush.msra.mxu0 0.0
    %90 = vmatpush.msra.mxu0 0.0
    %91 = vmatpush.msra.mxu0 0.0
    %92 = vmatpush.msra.mxu0 0.0
    %93 = vmatpush.msra.mxu0 0.0
    %94 = vmatpush.msra.mxu0 0.0
    %95 = vmatpush.msra.mxu0 0.0
    %96 = vmatpush.msra.mxu0 0.0
    %97 = vmatpush.msra.mxu0 0.0
    %98 = vmatpush.msra.mxu0 0.0
    %99 = vmatpush.msra.mxu0 %v78
    %100 = vmatpush.msra.mxu0 %v77
    %101 = vmatpush.msra.mxu0 %v76
    %102 = vmatpush.msra.mxu0 %v75
    %103 = vmatmul.f32.gmra.mxu0 %v85
    %v104 = vpop.f32.mrf.mxu0
    %v105 = vadd.f32 %v81, %v104
    %106 = vdwg.mxu0
    %v107 = vmax.f32 %v105, 0.0
    %v108 = vld [vmem:[%s5] sm:$0xff]
    %v109 = vld [vmem:[%s5 + $0x8] sm:$0xff]
    %v110 = vld [vmem:[%s5 + $0x10] sm:$0xff]
    %v111 = vld [vmem:[%s5 + $0x18] sm:$0xff]
    %v112 = vld [vmem:[%s6] sm:$0x1]
    %v114 = vperm.slane %v112, 0
    %v117 = vsel %vm83, %v107, 0
    %119 = vmatpush.msra.mxu0 0.0
    %120 = vmatpush.msra.mxu0 0.0
    %121 = vmatpush.msra.mxu0 0.0
    %122 = vmatpush.msra.mxu0 0.0
    %123 = vmatpush.msra.mxu0 0.0
    %124 = vmatpush.msra.mxu0 0.0
    %125 = vmatpush.msra.mxu0 0.0
    %126 = vmatpush.msra.mxu0 0.0
    %127 = vmatpush.msra.mxu0 0.0
    %128 = vmatpush.msra.mxu0 0.0
    %129 = vmatpush.msra.mxu0 0.0
    %130 = vmatpush.msra.mxu0 0.0
    %131 = vmatpush.msra.mxu0 %v111
    %132 = vmatpush.msra.mxu0 %v110
    %133 = vmatpush.msra.mxu0 %v109
    %134 = vmatpush.msra.mxu0 %v108
    %135 = vmatmul.f32.gmra.mxu0 %v117
    %v136 = vpop.f32.mrf.mxu0
    %v137 = vadd.f32 %v114, %v136
    %138 = vdwg.mxu0
    %v139 = vmax.f32 %v137, -10.0
    %v140 = vmin.f32 %v139, 2.0
    %v141 = vmul.f32 %v140, 1.442695
    %v142 = vpow.pop %v141
    %v143 = vadd.f32 %v142, 1.0
    %v144 = vlog2.pop %v143
    %v145 = vmul.f32 %v144, 0.6931472
    %v146 = vmul.f32 -0.5, %v142
    %v147 = vadd.f32 %v146, 1.0
    %v148 = vmul.f32 %v147, %v142
    %v149 = vand.u32 2147483647, %v142
    %vm150 = vcmp.lt.f32.partialorder %v149, 0.0004427343
    %v151 = vsel %vm150, %v148, %v145
    %v152 = vlaneseq
    %v153 = vand.u32 %v152, 127
    %vm154 = vcmp.ge.s32.totalorder %v153, 4
    %v155 = vsel %vm154, %v151, %v137
    %vm156 = vcmask 64512
    %157 = vst.msk [vmem:[#allocation5] sm:$0xff] %vm156, %v155
    // Predicated region
    $region34: #{tpu_custom_call.1} parent=1 // pred_check
      _
    $region35: #{tpu_custom_call.1} parent=1 // pred_check_branch
      %159 = sbr.rel (0) target = $region37
    $region36: #{tpu_custom_call.1} parent=1 // pred_region
      %161 = vsyncadd [#allocation4], 0
      %s163 = sshll.u32 [#allocation5], 4
      %s164 = int_to_ptr.vmem [resolvable:$true] %s163
      %s165 = sshll.u32 %s7, 4
      %s166 = int_to_ptr.hbm [resolvable:$true] %s165
      %168 = dma.vmem_to_hbm [thread:$0]  %s164, 128, %s166, [#allocation4]
    $region37: #{tpu_custom_call.1} parent=1 // pred_fallthru
      _
    // Predicated region
    $region38: #{tpu_custom_call.1} parent=1 // pred_check
      _
    $region39: #{tpu_custom_call.1} parent=1 // pred_check_branch
      %170 = sbr.rel (0) target = $region41
    $region40: #{tpu_custom_call.1} parent=1 // pred_region
      %172 = dma.done [#allocation4], 128
    $region41: #{tpu_custom_call.1} parent=1 // pred_fallthru
      _
    %173 = vsyncpa [#allocation3], 1
    %174 = vsyncpa [#allocation4], 1

</llo_original>
